<compile_context>
chip_gen: v7x
topology: tpu7x:2x2x1
jax: 0.10.0
libtpu: 0.0.40
codegen_flags: <defaults>
</compile_context>

<pallas_src>
import functools
import math

import jax
import jax.numpy as jnp
from jax.experimental import pallas as pl
from jax.experimental.pallas import tpu as pltpu


# ------------------------------ Pallas kernel -------------------------------

def _conv_bn_relu_cat_kernel(x_ref, w_ref, s_ref, b_ref, o_ref):
    """Fused Conv1d(k=3, s=2, no bias) + BN affine + ReLU + x3 channel concat.

    x_ref: (bt, 2, Lout+1, Cin) bf16  parity-split channel-last input:
           x_ref[b, 0, h, :] = x[b, :, 2h],  x_ref[b, 1, h, :] = x[b, :, 2h+1]
    w_ref: (K=3, Cin, Cout) bf16      per-tap weights, channel-last
    s_ref: (1, Cout) f32              folded BN scale  (gamma / sqrt(var+eps))
    b_ref: (1, Cout) f32              folded BN bias   (beta - mean*scale)
    o_ref: (bt, Lout, 3*Cout)         output, channel-last, three identical slabs
    """
    bt, lout, cout3 = o_ref.shape
    cout = cout3 // 3

    def tap(parity, start):
        # Ref-level contiguous loads (no value-level sublane-shift slices);
        # fold batch into the MXU M dimension with an aligned sublane concat.
        rows = [x_ref[b, parity, pl.ds(start, lout), :] for b in range(bt)]
        return rows[0] if bt == 1 else jnp.concatenate(rows, axis=0)

    t0 = tap(0, 0)   # x[2l]
    t1 = tap(1, 0)   # x[2l + 1]
    t2 = tap(0, 1)   # x[2l + 2]

    # Statically-unrolled K=3 tap loop; bf16 on the MXU, f32 accumulation.
    acc = jnp.dot(t0, w_ref[0], preferred_element_type=jnp.float32)
    acc = acc + jnp.dot(t1, w_ref[1], preferred_element_type=jnp.float32)
    acc = acc + jnp.dot(t2, w_ref[2], preferred_element_type=jnp.float32)

    # BN affine + ReLU in f32.
    y = jnp.maximum(acc * s_ref[...] + b_ref[...], 0.0)
    y = y.reshape(bt, lout, cout).astype(o_ref.dtype)

    # Eval mode: the three conv/bn/relu/dropout branches are identical, so the
    # channel concat is three 128-lane-aligned (unmasked) stores.
    o_ref[:, :, 0 * cout:1 * cout] = y
    o_ref[:, :, 1 * cout:2 * cout] = y
    o_ref[:, :, 2 * cout:3 * cout] = y


# ------------------------------ wrapper --------------------------------------

def _pick_batch_tile(B, Lout):
    """Fold batches into the MXU M dim (target ~256 rows, v6e/v7x MXU height)
    while keeping >=2 grid steps (v7x has 2 TensorCores), keeping the sublane
    concat aligned (Lout % 8 == 0), and keeping per-step blocks small vs VMEM
    (v7x has only 64 MiB)."""
    if Lout % 8 != 0:
        return 1
    bt = min(B, max(1, -(-256 // Lout)))        # aim for M ~= 256 rows per dot
    bt = min(bt, max(1, 4096 // Lout))          # VMEM-friendly block rows
    if B >= 2:
        bt = min(bt, B // 2)                    # >= 2 grid steps for v7x megacore
    while B % bt:
        bt -= 1
    return max(bt, 1)


def multiscale_module4_forward(x, w, gamma, beta, running_mean, running_var,
                               eps=1e-5, *, channels_last_out=True,
                               batch_tile=None, out_dtype=jnp.float32,
                               training=False):
    """x: (B, 192, L) f32 NCL; w: (128, 192, 3) f32 (PyTorch Conv1d layout).

    Returns the MultiscaleCNN_Module4 eval-mode forward:
      channels_last_out=True  -> (B, Lout, 384)   (preferred: no output transpose)
      channels_last_out=False -> (B, 384, Lout)   (PyTorch NCL layout; extra HBM pass)
    with Lout = (L - 3) // 2 + 1.
    """
    if training:
        # TODO(synk): training-mode dropout RNG (branches would differ) and
        # BN batch-statistics are not modeled; eval-mode forward only.
        raise NotImplementedError("eval-mode forward only")

    B, Cin, L = x.shape
    Cout, _, K = w.shape
    assert K == 3
    Lout = (L - K) // 2 + 1
    Lh = Lout + 1                 # rows per parity stream
    Lpad = 2 * Lh                 # padded length (pad is 0 or 1, never read)

    # Fold eval-mode BatchNorm into a per-channel affine (f32).
    scale = (gamma / jnp.sqrt(running_var + eps)).astype(jnp.float32)
    bias = (beta - running_mean * scale).astype(jnp.float32)

    # ONE fused layout pass over x: pad-to-even, even/odd de-interleave,
    # channel-last, bf16 cast.  (B, Cin, L) -> (B, 2, Lout+1, Cin) bf16.
    x_p = x if L == Lpad else jnp.pad(x, ((0, 0), (0, 0), (0, Lpad - L)))
    x_eo = jnp.transpose(x_p.reshape(B, Cin, Lh, 2), (0, 3, 2, 1)).astype(jnp.bfloat16)

    # Weights: (Cout, Cin, K) -> per-tap channel-last (K, Cin, Cout), bf16 (~147 KB).
    w_taps = jnp.transpose(w, (2, 1, 0)).astype(jnp.bfloat16)

    bt = batch_tile if batch_tile is not None else _pick_batch_tile(B, Lout)
    assert B % bt == 0

    out_cl = pl.pallas_call(
        _conv_bn_relu_cat_kernel,
        grid=(B // bt,),
        in_specs=[
            pl.BlockSpec((bt, 2, Lh, Cin), lambda i: (i, 0, 0, 0)),
            pl.BlockSpec((K, Cin, Cout), lambda i: (0, 0, 0)),
            pl.BlockSpec((1, Cout), lambda i: (0, 0)),
            pl.BlockSpec((1, Cout), lambda i: (0, 0)),
        ],
        out_specs=pl.BlockSpec((bt, Lout, 3 * Cout), lambda i: (i, 0, 0)),
        out_shape=jax.ShapeDtypeStruct((B, Lout, 3 * Cout), out_dtype),
        compiler_params=pltpu.CompilerParams(
            dimension_semantics=("parallel",)),
    )(x_eo, w_taps, scale.reshape(1, Cout), bias.reshape(1, Cout))

    if channels_last_out:
        return out_cl
    # PyTorch NCL layout: full extra HBM round trip of the largest tensor --
    # prefer channel-last consumers when possible.
    return jnp.transpose(out_cl, (0, 2, 1))


# ------------------------------ parameters -----------------------------------

def make_params(key):
    Cout, Cin, K = 128, 192, 3
    k1, k2, k3, k4, k5 = jax.random.split(key, 5)
    std = 1.0 / math.sqrt(Cin * K)
    w = (std * jax.random.normal(k1, (Cout, Cin, K))).astype(jnp.float32)
    gamma = (1.0 + 0.1 * jax.random.normal(k2, (Cout,))).astype(jnp.float32)
    beta = (0.1 * jax.random.normal(k3, (Cout,))).astype(jnp.float32)
    rmean = (0.05 * jax.random.normal(k4, (Cout,))).astype(jnp.float32)
    rvar = (1.0 + 0.1 * jax.random.uniform(k5, (Cout,))).astype(jnp.float32)
    return w, gamma, beta, rmean, rvar


# --------------------------------- main ---------------------------------------

if __name__ == "__main__":
    key = jax.random.PRNGKey(0)
    kx, kp = jax.random.split(key)

    # Small shapes consistent with the module (Cin=192 fixed by the conv).
    B, Cin, L = 4, 192, 33                      # Lout = (33 - 3)//2 + 1 = 16
    x = jax.random.normal(kx, (B, Cin, L), dtype=jnp.float32)
    w, gamma, beta, rmean, rvar = make_params(kp)

    Lout = (L - 3) // 2 + 1

    # Pure-JAX f32 reference (eval mode: dropout = identity, BN running stats).
    scale = gamma / jnp.sqrt(rvar + 1e-5)
    bias = beta - rmean * scale
    ref = jax.lax.conv_general_dilated(
        x, w, window_strides=(2,), padding="VALID",
        dimension_numbers=("NCH", "OIH", "NCH"))
    ref = jnp.maximum(ref * scale[None, :, None] + bias[None, :, None], 0.0)
    ref = jnp.concatenate([ref, ref, ref], axis=1)          # (B, 384, Lout)
    ref_cl = jnp.transpose(ref, (0, 2, 1))                  # (B, Lout, 384)

    # Optimized path: channel-last output (no output transpose).
    fwd_cl = jax.jit(functools.partial(multiscale_module4_forward,
                                       channels_last_out=True))
    out_cl = fwd_cl(x, w, gamma, beta, rmean, rvar)
    jax.block_until_ready(out_cl)
    assert out_cl.shape == (B, Lout, 3 * 128), out_cl.shape
    err = float(jnp.max(jnp.abs(out_cl - ref_cl)))
    assert err < 5e-2, f"max abs error (channel-last) {err}"   # bf16 MXU tolerance

    # PyTorch-layout path (module semantics): (B, 384, Lout).
    fwd_ncl = jax.jit(functools.partial(multiscale_module4_forward,
                                        channels_last_out=False))
    out_ncl = fwd_ncl(x, w, gamma, beta, rmean, rvar)
    jax.block_until_ready(out_ncl)
    assert out_ncl.shape == (B, 3 * 128, Lout), out_ncl.shape
    err2 = float(jnp.max(jnp.abs(out_ncl - ref)))
    assert err2 < 5e-2, f"max abs error (NCL) {err2}"

    print("KERNEL_OK")
</pallas_src>

<mosaic_0001>
module attributes {stable_mosaic.version = 11 : i64} {
  func.func @_conv_bn_relu_cat_kernel(%arg0: i32, %arg1: memref<2x2x17x192xbf16, #tpu.memory_space<vmem>>, %arg2: memref<3x192x128xbf16, #tpu.memory_space<vmem>>, %arg3: memref<1x128xf32, #tpu.memory_space<vmem>>, %arg4: memref<1x128xf32, #tpu.memory_space<vmem>>, %arg5: memref<2x16x384xf32, #tpu.memory_space<vmem>>) attributes {dimension_semantics = [#tpu.dimension_semantics<parallel>], iteration_bounds = array<i64: 2>, scalar_prefetch = 0 : i64, scratch_operands = 0 : i64, tpu.core_type = #tpu.core_type<tc>, window_params = [{transform_indices = @transform_0, window_bounds = array<i64: 2, 2, 17, 192>}, {pipeline_mode = #tpu.pipeline_mode<synchronous>, transform_indices = @transform_1, window_bounds = array<i64: 3, 192, 128>}, {pipeline_mode = #tpu.pipeline_mode<synchronous>, transform_indices = @transform_2, window_bounds = array<i64: 1, 128>}, {pipeline_mode = #tpu.pipeline_mode<synchronous>, transform_indices = @transform_3, window_bounds = array<i64: 1, 128>}, {transform_indices = @transform_4, window_bounds = array<i64: 2, 16, 384>}]} {
    %c0 = arith.constant 0 : index
    %c0_0 = arith.constant 0 : index
    %c0_1 = arith.constant 0 : index
    %c0_2 = arith.constant 0 : index
    %0 = vector.load %arg1[%c0, %c0_0, %c0_1, %c0_2] : memref<2x2x17x192xbf16, #tpu.memory_space<vmem>>, vector<1x1x16x192xbf16>
    %1 = vector.shape_cast %0 : vector<1x1x16x192xbf16> to vector<16x192xbf16>
    %c1 = arith.constant 1 : index
    %c0_3 = arith.constant 0 : index
    %c0_4 = arith.constant 0 : index
    %c0_5 = arith.constant 0 : index
    %2 = vector.load %arg1[%c1, %c0_3, %c0_4, %c0_5] : memref<2x2x17x192xbf16, #tpu.memory_space<vmem>>, vector<1x1x16x192xbf16>
    %3 = vector.shape_cast %2 : vector<1x1x16x192xbf16> to vector<16x192xbf16>
    %4 = tpu.concatenate %1, %3 in 0 : vector<16x192xbf16>, vector<16x192xbf16> -> vector<32x192xbf16>
    %c0_6 = arith.constant 0 : index
    %c1_7 = arith.constant 1 : index
    %c0_8 = arith.constant 0 : index
    %c0_9 = arith.constant 0 : index
    %5 = vector.load %arg1[%c0_6, %c1_7, %c0_8, %c0_9] : memref<2x2x17x192xbf16, #tpu.memory_space<vmem>>, vector<1x1x16x192xbf16>
    %6 = vector.shape_cast %5 : vector<1x1x16x192xbf16> to vector<16x192xbf16>
    %c1_10 = arith.constant 1 : index
    %c1_11 = arith.constant 1 : index
    %c0_12 = arith.constant 0 : index
    %c0_13 = arith.constant 0 : index
    %7 = vector.load %arg1[%c1_10, %c1_11, %c0_12, %c0_13] : memref<2x2x17x192xbf16, #tpu.memory_space<vmem>>, vector<1x1x16x192xbf16>
    %8 = vector.shape_cast %7 : vector<1x1x16x192xbf16> to vector<16x192xbf16>
    %9 = tpu.concatenate %6, %8 in 0 : vector<16x192xbf16>, vector<16x192xbf16> -> vector<32x192xbf16>
    %c0_14 = arith.constant 0 : index
    %c0_15 = arith.constant 0 : index
    %c1_16 = arith.constant 1 : index
    %c0_17 = arith.constant 0 : index
    %10 = vector.load %arg1[%c0_14, %c0_15, %c1_16, %c0_17] : memref<2x2x17x192xbf16, #tpu.memory_space<vmem>>, vector<1x1x16x192xbf16>
    %11 = vector.shape_cast %10 : vector<1x1x16x192xbf16> to vector<16x192xbf16>
    %c1_18 = arith.constant 1 : index
    %c0_19 = arith.constant 0 : index
    %c1_20 = arith.constant 1 : index
    %c0_21 = arith.constant 0 : index
    %12 = vector.load %arg1[%c1_18, %c0_19, %c1_20, %c0_21] : memref<2x2x17x192xbf16, #tpu.memory_space<vmem>>, vector<1x1x16x192xbf16>
    %13 = vector.shape_cast %12 : vector<1x1x16x192xbf16> to vector<16x192xbf16>
    %14 = tpu.concatenate %11, %13 in 0 : vector<16x192xbf16>, vector<16x192xbf16> -> vector<32x192xbf16>
    %c0_22 = arith.constant 0 : index
    %c0_23 = arith.constant 0 : index
    %c0_24 = arith.constant 0 : index
    %15 = vector.load %arg2[%c0_22, %c0_23, %c0_24] : memref<3x192x128xbf16, #tpu.memory_space<vmem>>, vector<1x192x128xbf16>
    %16 = vector.shape_cast %15 : vector<1x192x128xbf16> to vector<192x128xbf16>
    %cst = arith.constant dense<0.000000e+00> : vector<32x128xf32>
    %17 = tpu.matmul %4, %16, %cst {dimension_numbers = #tpu.dot_dimension_numbers<[1], [0], [0], [1], [0, 0, 1, 1], [], []>} : vector<32x192xbf16>, vector<192x128xbf16>, vector<32x128xf32> -> vector<32x128xf32>
    %c1_25 = arith.constant 1 : index
    %c0_26 = arith.constant 0 : index
    %c0_27 = arith.constant 0 : index
    %18 = vector.load %arg2[%c1_25, %c0_26, %c0_27] : memref<3x192x128xbf16, #tpu.memory_space<vmem>>, vector<1x192x128xbf16>
    %19 = vector.shape_cast %18 : vector<1x192x128xbf16> to vector<192x128xbf16>
    %cst_28 = arith.constant dense<0.000000e+00> : vector<32x128xf32>
    %20 = tpu.matmul %9, %19, %cst_28 {dimension_numbers = #tpu.dot_dimension_numbers<[1], [0], [0], [1], [0, 0, 1, 1], [], []>} : vector<32x192xbf16>, vector<192x128xbf16>, vector<32x128xf32> -> vector<32x128xf32>
    %21 = arith.addf %17, %20 : vector<32x128xf32>
    %c2 = arith.constant 2 : index
    %c0_29 = arith.constant 0 : index
    %c0_30 = arith.constant 0 : index
    %22 = vector.load %arg2[%c2, %c0_29, %c0_30] : memref<3x192x128xbf16, #tpu.memory_space<vmem>>, vector<1x192x128xbf16>
    %23 = vector.shape_cast %22 : vector<1x192x128xbf16> to vector<192x128xbf16>
    %cst_31 = arith.constant dense<0.000000e+00> : vector<32x128xf32>
    %24 = tpu.matmul %14, %23, %cst_31 {dimension_numbers = #tpu.dot_dimension_numbers<[1], [0], [0], [1], [0, 0, 1, 1], [], []>} : vector<32x192xbf16>, vector<192x128xbf16>, vector<32x128xf32> -> vector<32x128xf32>
    %25 = arith.addf %21, %24 : vector<32x128xf32>
    %c0_32 = arith.constant 0 : index
    %c0_33 = arith.constant 0 : index
    %26 = vector.load %arg3[%c0_32, %c0_33] : memref<1x128xf32, #tpu.memory_space<vmem>>, vector<1x128xf32>
    %27 = vector.broadcast %26 : vector<1x128xf32> to vector<32x128xf32>
    %28 = arith.mulf %25, %27 : vector<32x128xf32>
    %c0_34 = arith.constant 0 : index
    %c0_35 = arith.constant 0 : index
    %29 = vector.load %arg4[%c0_34, %c0_35] : memref<1x128xf32, #tpu.memory_space<vmem>>, vector<1x128xf32>
    %30 = vector.broadcast %29 : vector<1x128xf32> to vector<32x128xf32>
    %31 = arith.addf %28, %30 : vector<32x128xf32>
    %cst_36 = arith.constant 0.000000e+00 : f32
    %32 = vector.broadcast %cst_36 : f32 to vector<32x128xf32>
    %33 = arith.maximumf %31, %32 : vector<32x128xf32>
    %34 = vector.shape_cast %33 : vector<32x128xf32> to vector<2x16x128xf32>
    %c0_37 = arith.constant 0 : index
    %c0_38 = arith.constant 0 : index
    %c0_39 = arith.constant 0 : index
    %35 = vector.load %arg5[%c0_37, %c0_38, %c0_39] : memref<2x16x384xf32, #tpu.memory_space<vmem>>, vector<2x16x128xf32>
    tpu.vector_store %arg5[%c0_37, %c0_38, %c0_39], %34 {strides = array<i32>} : memref<2x16x384xf32, #tpu.memory_space<vmem>>, vector<2x16x128xf32>,
    %c0_40 = arith.constant 0 : index
    %c0_41 = arith.constant 0 : index
    %c128 = arith.constant 128 : index
    %36 = vector.load %arg5[%c0_40, %c0_41, %c128] : memref<2x16x384xf32, #tpu.memory_space<vmem>>, vector<2x16x128xf32>
    tpu.vector_store %arg5[%c0_40, %c0_41, %c128], %34 {strides = array<i32>} : memref<2x16x384xf32, #tpu.memory_space<vmem>>, vector<2x16x128xf32>,
    %c0_42 = arith.constant 0 : index
    %c0_43 = arith.constant 0 : index
    %c256 = arith.constant 256 : index
    %37 = vector.load %arg5[%c0_42, %c0_43, %c256] : memref<2x16x384xf32, #tpu.memory_space<vmem>>, vector<2x16x128xf32>
    tpu.vector_store %arg5[%c0_42, %c0_43, %c256], %34 {strides = array<i32>} : memref<2x16x384xf32, #tpu.memory_space<vmem>>, vector<2x16x128xf32>,
    return
  }
  func.func @transform_0(%arg0: i32) -> (i32, i32, i32, i32) {
    %c0_i32 = arith.constant 0 : i32
    %c0_i32_0 = arith.constant 0 : i32
    %c0_i32_1 = arith.constant 0 : i32
    %c0_i32_2 = arith.constant 0 : i32
    return %arg0, %c0_i32, %c0_i32_0, %c0_i32_1 : i32, i32, i32, i32
  }
  func.func @transform_1(%arg0: i32) -> (i32, i32, i32) {
    %c0_i32 = arith.constant 0 : i32
    %c0_i32_0 = arith.constant 0 : i32
    %c0_i32_1 = arith.constant 0 : i32
    %c0_i32_2 = arith.constant 0 : i32
    return %c0_i32, %c0_i32_0, %c0_i32_1 : i32, i32, i32
  }
  func.func @transform_2(%arg0: i32) -> (i32, i32) {
    %c0_i32 = arith.constant 0 : i32
    %c0_i32_0 = arith.constant 0 : i32
    %c0_i32_1 = arith.constant 0 : i32
    return %c0_i32, %c0_i32_0 : i32, i32
  }
  func.func @transform_3(%arg0: i32) -> (i32, i32) {
    %c0_i32 = arith.constant 0 : i32
    %c0_i32_0 = arith.constant 0 : i32
    %c0_i32_1 = arith.constant 0 : i32
    return %c0_i32, %c0_i32_0 : i32, i32
  }
  func.func @transform_4(%arg0: i32) -> (i32, i32, i32) {
    %c0_i32 = arith.constant 0 : i32
    %c0_i32_0 = arith.constant 0 : i32
    %c0_i32_1 = arith.constant 0 : i32
    return %arg0, %c0_i32, %c0_i32_0 : i32, i32, i32
  }
}

</mosaic_0001>

<llo_original>
// kernel: multiscale_module4_forward.1
$region0: #{multiscale_module4_forward.1}
  #allocation0 [shape = 'u32[]', space=smem, size = 0x4, offset = 0x4, fixed_abs, tag = 'smem constant byte address 0x4 - core index']
  #allocation1 [shape = 'u32[144,128]{1,0:T(1,128)}', space=vmem, size = 0x12000, scoped, tag = 'internal scratch']
  %s0 = inlined_call_operand.vmem [shape: bf16[4,2,17,192], index: 0, kind: input, shape index: {}]
  %s1 = inlined_call_operand.vmem [shape: bf16[3,192,128], index: 1, kind: input, shape index: {}]
  %s2 = inlined_call_operand.vmem [shape: f32[1,128], index: 2, kind: input, shape index: {}]
  %s3 = inlined_call_operand.vmem [shape: f32[1,128], index: 3, kind: input, shape index: {}]
  %s4 = inlined_call_operand.hbm [shape: f32[4,16,384], index: 4, kind: output, shape index: {}]
  %s5 = sld [smem:[#allocation0]]
  $region49: #{multiscale_module4_forward.1} parent=0
    _
  %s7 = ssub.s32 1, %s5
  %s8 = scalar_select 0, %s7, %s5
  $region1: #{multiscale_module4_forward.1} parent=0
    #allocation2 [shape = 'u8[98304]{0}', space=vmem, size = 0x18000, scoped, tag = 'output window, operand 0']
    #allocation3 [shape = 's32[2]{0}', space=sflag, size = 0x8, scoped, tag = 'scoped memory for multiscale_module4_forward.1']
    %9 = vsyncpa [#allocation3], 0
    %s10 = scalar_lea.sflag [#allocation3], 1
    %11 = vsyncpa %s10, 0
    loop: start=0, step=1, limit=4
    $region2: #{multiscale_module4_forward.1} parent=1 // loop_pre_header
      _
    $region3: #{multiscale_module4_forward.1} parent=1 // loop_header
      %s13 = sphi 0, %s17
      %p14 = scmp.ge.s32.totalorder %s13, 4
      %s23 = sphi 0, %s25
      %s26 = sphi 0, %s23
      %s27 = sphi 0, %s26
      %s43 = sphi 0, %s27
      %s47 = sphi 0, %s47
      %s49 = sphi 0, %s47
      %s50 = sphi 0, %s49
      %s64 = sphi 0, %s50
      %s68 = sphi 0, %s68
      %s70 = sphi 0, %s68
      %s71 = sphi 0, %s70
      %s85 = sphi 0, %s71
      %s89 = sphi 0, %s89
      %s91 = sphi 0, %s89
      %s92 = sphi 0, %s91
      %s106 = sphi 0, %s92
      %s112 = sphi 0, %s114
      %s115 = sphi 0, %s112
      %s116 = sphi 0, %s115
      %s132 = sphi 0, %s116
    $region4: #{multiscale_module4_forward.1} parent=1 // loop_header_branch
      %16 = sbr.rel (%p14) target = $region8
    $region5: #{multiscale_module4_forward.1} parent=1 // loop_body
      %s18 = ssub.s32 %s13, 1
      %s19 = ssub.s32 %s13, 2
      %s20 = sadd.s32 %s13, 1
      %s21 = ssub.s32 %s13, %s20
      %p22 = scmp.eq.s32.totalorder %s21, 0
      %s24 = sadd.s32 %s23, 1
      %s25 = scalar_select %p22, %s23, %s24
      %p28 = pneg %p22
      %p29 = scmp.eq.s32.totalorder %s13, 1
      %p30 = por %p28, %p29
      %p31 = scmp.ne.s32.totalorder %s23, %s26
      %p32 = scmp.eq.s32.totalorder %s13, 0
      %p33 = por %p31, %p32
      %p34 = scmp.ne.s32.totalorder %s23, %s26
      %p35 = scmp.eq.s32.totalorder %s18, 1
      %p36 = por %p34, %p35
      %p37 = scmp.ne.s32.totalorder %s26, %s27
      %p38 = scmp.eq.s32.totalorder %s18, 0
      %p39 = por %p37, %p38
      %p40 = scmp.ne.s32.totalorder %s26, %s27
      %p41 = scmp.eq.s32.totalorder %s19, 1
      %p42 = por %p40, %p41
      %p44 = scmp.ne.s32.totalorder %s27, %s43
      %p45 = scmp.eq.s32.totalorder %s19, 0
      %p46 = por %p44, %p45
      %s48 = sadd.s32 %s47, 1
      %p51 = scmp.eq.s32.totalorder %s13, 1
      %p52 = scmp.ne.s32.totalorder %s47, %s49
      %p53 = scmp.eq.s32.totalorder %s13, 0
      %p54 = por %p52, %p53
      %p55 = scmp.ne.s32.totalorder %s47, %s49
      %p56 = scmp.eq.s32.totalorder %s18, 1
      %p57 = por %p55, %p56
      %p58 = scmp.ne.s32.totalorder %s49, %s50
      %p59 = scmp.eq.s32.totalorder %s18, 0
      %p60 = por %p58, %p59
      %p61 = scmp.ne.s32.totalorder %s49, %s50
      %p62 = scmp.eq.s32.totalorder %s19, 1
      %p63 = por %p61, %p62
      %p65 = scmp.ne.s32.totalorder %s50, %s64
      %p66 = scmp.eq.s32.totalorder %s19, 0
      %p67 = por %p65, %p66
      %s69 = sadd.s32 %s68, 1
      %p72 = scmp.eq.s32.totalorder %s13, 1
      %p73 = scmp.ne.s32.totalorder %s68, %s70
      %p74 = scmp.eq.s32.totalorder %s13, 0
      %p75 = por %p73, %p74
      %p76 = scmp.ne.s32.totalorder %s68, %s70
      %p77 = scmp.eq.s32.totalorder %s18, 1
      %p78 = por %p76, %p77
      %p79 = scmp.ne.s32.totalorder %s70, %s71
      %p80 = scmp.eq.s32.totalorder %s18, 0
      %p81 = por %p79, %p80
      %p82 = scmp.ne.s32.totalorder %s70, %s71
      %p83 = scmp.eq.s32.totalorder %s19, 1
      %p84 = por %p82, %p83
      %p86 = scmp.ne.s32.totalorder %s71, %s85
      %p87 = scmp.eq.s32.totalorder %s19, 0
      %p88 = por %p86, %p87
      %s90 = sadd.s32 %s89, 1
      %p93 = scmp.eq.s32.totalorder %s13, 1
      %p94 = scmp.ne.s32.totalorder %s89, %s91
      %p95 = scmp.eq.s32.totalorder %s13, 0
      %p96 = por %p94, %p95
      %p97 = scmp.ne.s32.totalorder %s89, %s91
      %p98 = scmp.eq.s32.totalorder %s18, 1
      %p99 = por %p97, %p98
      %p100 = scmp.ne.s32.totalorder %s91, %s92
      %p101 = scmp.eq.s32.totalorder %s18, 0
      %p102 = por %p100, %p101
      %p103 = scmp.ne.s32.totalorder %s91, %s92
      %p104 = scmp.eq.s32.totalorder %s19, 1
      %p105 = por %p103, %p104
      %p107 = scmp.ne.s32.totalorder %s92, %s106
      %p108 = scmp.eq.s32.totalorder %s19, 0
      %p109 = por %p107, %p108
      %s110 = ssub.s32 %s13, %s20
      %p111 = scmp.eq.s32.totalorder %s110, 0
      %s113 = sadd.s32 %s112, 1
      %s114 = scalar_select %p111, %s112, %s113
      %p117 = pneg %p111
      %p118 = scmp.eq.s32.totalorder %s13, 1
      %p119 = por %p117, %p118
      %p120 = scmp.ne.s32.totalorder %s112, %s115
      %p121 = scmp.eq.s32.totalorder %s13, 0
      %p122 = por %p120, %p121
      %p123 = scmp.ne.s32.totalorder %s112, %s115
      %p124 = scmp.eq.s32.totalorder %s18, 1
      %p125 = por %p123, %p124
      %p126 = scmp.ne.s32.totalorder %s115, %s116
      %p127 = scmp.eq.s32.totalorder %s18, 0
      %p128 = por %p126, %p127
      %p129 = scmp.ne.s32.totalorder %s115, %s116
      %p130 = scmp.eq.s32.totalorder %s19, 1
      %p131 = por %p129, %p130
      %p133 = scmp.ne.s32.totalorder %s116, %s132
      %p134 = scmp.eq.s32.totalorder %s19, 0
      %p135 = por %p133, %p134
      %p136 = scmp.le.s32.totalorder 1, %s13
      %p137 = scmp.lt.s32.totalorder %s13, 3
      %p138 = pnand %p136, %p137
      %p139 = pneg %p138
      // Predicated region
      $region9: #{multiscale_module4_forward.1} parent=5 // pred_check
        _
      $region10: #{multiscale_module4_forward.1} parent=5 // pred_check_branch
        %141 = sbr.rel (%p138) target = $region12
      $region11: #{multiscale_module4_forward.1} parent=5 // pred_region
        %s142 = ssub.s32 %s13, 1
        // Predicated region
        $region13: #{multiscale_module4_forward.1} parent=11 // pred_check
          %p143 = pneg %p60
        $region14: #{multiscale_module4_forward.1} parent=11 // pred_check_branch
          %145 = sbr.rel (%p143) target = $region16
        $region15: #{multiscale_module4_forward.1} parent=11 // pred_region
          _
        $region16: #{multiscale_module4_forward.1} parent=11 // pred_fallthru
          _
        // Predicated region
        $region17: #{multiscale_module4_forward.1} parent=11 // pred_check
          %p146 = pneg %p81
        $region18: #{multiscale_module4_forward.1} parent=11 // pred_check_branch
          %148 = sbr.rel (%p146) target = $region20
        $region19: #{multiscale_module4_forward.1} parent=11 // pred_region
          _
        $region20: #{multiscale_module4_forward.1} parent=11 // pred_fallthru
          _
        // Predicated region
        $region21: #{multiscale_module4_forward.1} parent=11 // pred_check
          %p149 = pneg %p102
        $region22: #{multiscale_module4_forward.1} parent=11 // pred_check_branch
          %151 = sbr.rel (%p149) target = $region24
        $region23: #{multiscale_module4_forward.1} parent=11 // pred_region
          _
        $region24: #{multiscale_module4_forward.1} parent=11 // pred_fallthru
          _
      $region12: #{multiscale_module4_forward.1} parent=5 // pred_fallthru
        _
      %p152 = scmp.lt.s32.totalorder %s13, 2
      // Predicated region
      $region25: #{multiscale_module4_forward.1} parent=5 // pred_check
        %p153 = pneg %p152
      $region26: #{multiscale_module4_forward.1} parent=5 // pred_check_branch
        %155 = sbr.rel (%p153) target = $region28
      $region27: #{multiscale_module4_forward.1} parent=5 // pred_region
        // Predicated region
        $region29: #{multiscale_module4_forward.1} parent=27 // pred_check
          %p156 = pneg %p33
        $region30: #{multiscale_module4_forward.1} parent=27 // pred_check_branch
          %158 = sbr.rel (%p156) target = $region32
        $region31: #{multiscale_module4_forward.1} parent=27 // pred_region
          %s159 = smul.u32 2, %s13
          %p160 = scmp.lt.s32.totalorder %s159, 3
          %s161 = scalar_select %p160, %s159, 3
          %s162 = smul.addr %s161, 12
          %s163 = smul.addr %s162, 4
          %s164 = scalar_lea.vmem %s0, %s163
          %s165 = smul.u32 2, %s13
        $region32: #{multiscale_module4_forward.1} parent=27 // pred_fallthru
          _
      $region28: #{multiscale_module4_forward.1} parent=5 // pred_fallthru
        _
      %p166 = scmp.le.s32.totalorder 1, %s13
      %p167 = scmp.lt.s32.totalorder %s13, 3
      %p168 = pnand %p166, %p167
      %p169 = pneg %p168
      // Predicated region
      $region33: #{multiscale_module4_forward.1} parent=5 // pred_check
        _
      $region34: #{multiscale_module4_forward.1} parent=5 // pred_check_branch
        %171 = sbr.rel (%p168) target = $region36
      $region35: #{multiscale_module4_forward.1} parent=5 // pred_region
        %s172 = ssub.s32 %s13, 1
        %s173 = smul.u32 2, %s18
        %p174 = scmp.lt.s32.totalorder %s173, 3
        %s175 = scalar_select %p174, %s173, 3
        %s176 = smul.addr %s175, 12
        %s177 = smul.addr %s176, 4
        %s178 = scalar_lea.vmem %s0, %s177
        %p179 = pneg %p39
        %p180 = pneg %p36
        %p181 = pneg %p60
        %p182 = pneg %p57
        %p183 = pneg %p81
        %p184 = pneg %p78
        %p185 = pneg %p102
        %p186 = pneg %p99
        %p187 = pneg %p128
        %p188 = pneg %p125
        %s189 = sand.u32 %s115, 1
        %s190 = scalar_lea.sflag [#allocation3], %s189
        %s191 = sand.u32 %s115, 1
        %s192 = smul.addr %s191, 96
        %s193 = scalar_lea.vmem [#allocation2], %s192
        %s194 = smul.u32 2, %s18
        %p195 = scmp.lt.s32.totalorder %s194, 3
        %s196 = scalar_select %p195, %s194, 3
        %s197 = smul.addr %s196, 12
        %s198 = smul.addr %s197, 4
        %s199 = scalar_lea.vmem %s0, %s198
        %s200 = smul.u32 2, %s18
        %s201 = smul.u32 2, %s18
        %v203 = vld [vmem:[%s199] sm:$0xff]
        %v204 = vld [vmem:[%s199 + $0x8] sm:$0xff]
        %s205 = scalar_lea.vmem %s199, 48
        %v206 = vld [vmem:[%s205] sm:$0xff]
        %v207 = vld [vmem:[%s205 + $0x8] sm:$0xff]
        %v210 = vunpack.c.l.b16 %v203
        %v211 = vunpack.c.h.b16 %v203
        %v212 = vunpack.c.l.b16 %v204
        %v213 = vunpack.c.h.b16 %v204
        %v214 = vpack.c.b16 %v212, %v210
        %v215 = vpack.c.b16 %v213, %v211
        %v219 = vunpack.c.l.b16 %v206
        %v220 = vunpack.c.h.b16 %v206
        %v221 = vunpack.c.l.b16 %v207
        %v222 = vunpack.c.h.b16 %v207
        %v223 = vpack.c.b16 %v221, %v219
        %v224 = vpack.c.b16 %v222, %v220
        %s226 = scalar_lea.vmem %s199, 24
        %v227 = vld [vmem:[%s226] sm:$0xff]
        %v228 = vld [vmem:[%s226 + $0x8] sm:$0xff]
        %s229 = scalar_lea.vmem %s199, 72
        %v230 = vld [vmem:[%s229] sm:$0xff]
        %v231 = vld [vmem:[%s229 + $0x8] sm:$0xff]
        %v234 = vunpack.c.l.b16 %v227
        %v235 = vunpack.c.h.b16 %v227
        %v236 = vunpack.c.l.b16 %v228
        %v237 = vunpack.c.h.b16 %v228
        %v238 = vpack.c.b16 %v236, %v234
        %v239 = vpack.c.b16 %v237, %v235
        %v243 = vunpack.c.l.b16 %v230
        %v244 = vunpack.c.h.b16 %v230
        %v245 = vunpack.c.l.b16 %v231
        %v246 = vunpack.c.h.b16 %v231
        %v247 = vpack.c.b16 %v245, %v243
        %v248 = vpack.c.b16 %v246, %v244
        %v250 = vld [vmem:[%s199 + $0x10] sm:$0x11]
        %v251 = vld [vmem:[%s205 + $0x10] sm:$0x11]
        %v253 = vunpack.c.l.b16 %v250
        %v254 = vunpack.c.h.b16 %v250
        %v255 = vpack.c.b16 %v253, %v253
        %v256 = vpack.c.b16 %v254, %v254
        %vm257 = vsmask.f32 7424
        %v259 = vshrl.u32 %v214, 16
        %v261 = vshll.u32 %v214, 16
        %v263 = vrot.slane %v261, 1
        %v264 = vor.u32 %v259, %v263
        %v266 = vshll.u32 %v255, 16
        %v268 = vrot.slane %v266, 1
        %v269 = vsel %vm257, %v264, %v268
        %v271 = vshrl.u32 %v215, 16
        %v273 = vshll.u32 %v215, 16
        %v275 = vrot.slane %v273, 1
        %v276 = vor.u32 %v271, %v275
        %v278 = vshll.u32 %v256, 16
        %v280 = vrot.slane %v278, 1
        %v281 = vsel %vm257, %v276, %v280
        %v284 = vunpack.c.l.b16 %v251
        %v285 = vunpack.c.h.b16 %v251
        %v286 = vpack.c.b16 %v284, %v284
        %v287 = vpack.c.b16 %v285, %v285
        %v289 = vshrl.u32 %v223, 16
        %v291 = vshll.u32 %v223, 16
        %v293 = vrot.slane %v291, 1
        %v294 = vor.u32 %v289, %v293
        %v296 = vshll.u32 %v286, 16
        %v298 = vrot.slane %v296, 1
        %v299 = vsel %vm257, %v294, %v298
        %v301 = vshrl.u32 %v224, 16
        %v303 = vshll.u32 %v224, 16
        %v305 = vrot.slane %v303, 1
        %v306 = vor.u32 %v301, %v305
        %v308 = vshll.u32 %v287, 16
        %v310 = vrot.slane %v308, 1
        %v311 = vsel %vm257, %v306, %v310
        %v313 = vld [vmem:[%s1] sm:$0xf]
        %v314 = vld [vmem:[%s1 + $0x4] sm:$0xf]
        %v315 = vld [vmem:[%s1 + $0x8] sm:$0xf]
        %v316 = vld [vmem:[%s1 + $0xc] sm:$0xf]
        %v317 = vld [vmem:[%s1 + $0x10] sm:$0xf]
        %v318 = vld [vmem:[%s1 + $0x14] sm:$0xf]
        %v319 = vld [vmem:[%s1 + $0x18] sm:$0xf]
        %v320 = vld [vmem:[%s1 + $0x1c] sm:$0xf]
        %v321 = vld [vmem:[%s1 + $0x20] sm:$0xf]
        %v322 = vld [vmem:[%s1 + $0x24] sm:$0xf]
        %v323 = vld [vmem:[%s1 + $0x28] sm:$0xf]
        %v324 = vld [vmem:[%s1 + $0x2c] sm:$0xf]
        %v325 = vld [vmem:[%s1 + $0x30] sm:$0xf]
        %v326 = vld [vmem:[%s1 + $0x34] sm:$0xf]
        %v327 = vld [vmem:[%s1 + $0x38] sm:$0xf]
        %v328 = vld [vmem:[%s1 + $0x3c] sm:$0xf]
        %v329 = vld [vmem:[%s1 + $0x40] sm:$0xf]
        %v330 = vld [vmem:[%s1 + $0x44] sm:$0xf]
        %v331 = vld [vmem:[%s1 + $0x48] sm:$0xf]
        %v332 = vld [vmem:[%s1 + $0x4c] sm:$0xf]
        %v333 = vld [vmem:[%s1 + $0x50] sm:$0xf]
        %v334 = vld [vmem:[%s1 + $0x54] sm:$0xf]
        %v335 = vld [vmem:[%s1 + $0x58] sm:$0xf]
        %v336 = vld [vmem:[%s1 + $0x5c] sm:$0xf]
        %s337 = scalar_lea.vmem %s1, 96
        %v338 = vld [vmem:[%s337] sm:$0xf]
        %v339 = vld [vmem:[%s337 + $0x4] sm:$0xf]
        %v340 = vld [vmem:[%s337 + $0x8] sm:$0xf]
        %v341 = vld [vmem:[%s337 + $0xc] sm:$0xf]
        %v342 = vld [vmem:[%s337 + $0x10] sm:$0xf]
        %v343 = vld [vmem:[%s337 + $0x14] sm:$0xf]
        %v344 = vld [vmem:[%s337 + $0x18] sm:$0xf]
        %v345 = vld [vmem:[%s337 + $0x1c] sm:$0xf]
        %v346 = vld [vmem:[%s337 + $0x20] sm:$0xf]
        %v347 = vld [vmem:[%s337 + $0x24] sm:$0xf]
        %v348 = vld [vmem:[%s337 + $0x28] sm:$0xf]
        %v349 = vld [vmem:[%s337 + $0x2c] sm:$0xf]
        %v350 = vld [vmem:[%s337 + $0x30] sm:$0xf]
        %v351 = vld [vmem:[%s337 + $0x34] sm:$0xf]
        %v352 = vld [vmem:[%s337 + $0x38] sm:$0xf]
        %v353 = vld [vmem:[%s337 + $0x3c] sm:$0xf]
        %v354 = vld [vmem:[%s337 + $0x40] sm:$0xf]
        %v355 = vld [vmem:[%s337 + $0x44] sm:$0xf]
        %v356 = vld [vmem:[%s337 + $0x48] sm:$0xf]
        %v357 = vld [vmem:[%s337 + $0x4c] sm:$0xf]
        %v358 = vld [vmem:[%s337 + $0x50] sm:$0xf]
        %v359 = vld [vmem:[%s337 + $0x54] sm:$0xf]
        %v360 = vld [vmem:[%s337 + $0x58] sm:$0xf]
        %v361 = vld [vmem:[%s337 + $0x5c] sm:$0xf]
        %v386 = vunpack.c.l.b16 %v338
        %v387 = vunpack.c.l.b16 %v339
        %v388 = vunpack.c.l.b16 %v340
        %v389 = vunpack.c.l.b16 %v341
        %v390 = vunpack.c.l.b16 %v342
        %v391 = vunpack.c.l.b16 %v343
        %v392 = vunpack.c.l.b16 %v344
        %v393 = vunpack.c.l.b16 %v345
        %v394 = vunpack.c.l.b16 %v346
        %v395 = vunpack.c.l.b16 %v347
        %v396 = vunpack.c.l.b16 %v348
        %v397 = vunpack.c.l.b16 %v349
        %v398 = vunpack.c.l.b16 %v350
        %v399 = vunpack.c.l.b16 %v351
        %v400 = vunpack.c.l.b16 %v352
        %v401 = vunpack.c.l.b16 %v353
        %v402 = vunpack.c.l.b16 %v354
        %v403 = vunpack.c.l.b16 %v355
        %v404 = vunpack.c.l.b16 %v356
        %v405 = vunpack.c.l.b16 %v357
        %v406 = vunpack.c.l.b16 %v358
        %v407 = vunpack.c.l.b16 %v359
        %v408 = vunpack.c.l.b16 %v360
        %v409 = vunpack.c.l.b16 %v361
        %v410 = vpack.c.b16 %v387, %v386
        %v411 = vpack.c.b16 %v389, %v388
        %v412 = vpack.c.b16 %v391, %v390
        %v413 = vpack.c.b16 %v393, %v392
        %v414 = vpack.c.b16 %v395, %v394
        %v415 = vpack.c.b16 %v397, %v396
        %v416 = vpack.c.b16 %v399, %v398
        %v417 = vpack.c.b16 %v401, %v400
        %v418 = vpack.c.b16 %v403, %v402
        %v419 = vpack.c.b16 %v405, %v404
        %v420 = vpack.c.b16 %v407, %v406
        %v421 = vpack.c.b16 %v409, %v408
        %vm434 = vcmask 523264
        %v436 = vsel %vm434, %v239, 0
        %v439 = vsel %vm434, %v248, 0
        %441 = vmatprep.subr.bf16.mxu0 0
        %442 = vmatpush1.bf16.msra.mxu0 %v410
        %443 = vmatprep.subr.bf16.mxu0 0
        %444 = vmatpush1.bf16.msra.mxu0 %v411
        %445 = vmatprep.subr.bf16.mxu0 0
        %446 = vmatpush1.bf16.msra.mxu0 %v412
        %447 = vmatprep.subr.bf16.mxu0 0
        %448 = vmatpush1.bf16.msra.mxu0 %v413
        %449 = vmatprep.subr.bf16.mxu0 0
        %450 = vmatpush1.bf16.msra.mxu0 %v414
        %451 = vmatprep.subr.bf16.mxu0 0
        %452 = vmatpush1.bf16.msra.mxu0 %v415
        %453 = vmatprep.subr.bf16.mxu0 0
        %454 = vmatpush1.bf16.msra.mxu0 %v416
        %455 = vmatprep.subr.bf16.mxu0 0
        %456 = vmatpush1.bf16.msra.mxu0 %v417
        %457 = vmatprep.subr.bf16.mxu0 0
        %458 = vmatpush1.bf16.msra.mxu0 %v418
        %459 = vmatprep.subr.bf16.mxu0 0
        %460 = vmatpush1.bf16.msra.mxu0 %v419
        %461 = vmatprep.subr.bf16.mxu0 0
        %462 = vmatpush1.bf16.msra.mxu0 %v420
        %463 = vmatprep.subr.bf16.mxu0 0
        %464 = vmatpush1.bf16.msra.mxu0 %v421
        %465 = vmatprep.subr.bf16.mxu0 0
        %466 = vmatpush1.bf16.msra.mxu0 0
        %467 = vmatprep.subr.bf16.mxu0 0
        %468 = vmatpush1.bf16.msra.mxu0 0
        %469 = vmatprep.subr.bf16.mxu0 0
        %470 = vmatpush1.bf16.msra.mxu0 0
        %471 = vmatprep.subr.bf16.mxu0 0
        %472 = vmatpush1.bf16.msra.mxu0 0
        %473 = vmatprep.mubr.bf16.mxu0 %v436
        %474 = vmatmul.mubr.bf16.gmra.mrb[0].mxu0 %v238
        %v475 = vpop.f32.mrb[0].mxu0
        %v476 = vadd.f32 0.0, %v475
        %v477 = vpop.f32.mrb[0].mxu0
        %v478 = vpop.f32.mrb[0].mxu0
        %v479 = vadd.f32 0.0, %v478
        %v480 = vpop.f32.mrb[0].mxu0
        %481 = vmatprep.mubr.bf16.mxu0 %v439
        %482 = vmatmul.mubr.bf16.gmra.mrb[0].mxu0 %v247
        %v483 = vpop.f32.mrb[0].mxu0
        %v484 = vadd.f32 0.0, %v483
        %v485 = vpop.f32.mrb[0].mxu0
        %v486 = vpop.f32.mrb[0].mxu0
        %v487 = vadd.f32 0.0, %v486
        %v488 = vpop.f32.mrb[0].mxu0
        %489 = vdwg.mxu0
        %v514 = vunpack.c.l.b16 %v313
        %v515 = vunpack.c.l.b16 %v314
        %v516 = vunpack.c.l.b16 %v315
        %v517 = vunpack.c.l.b16 %v316
        %v518 = vunpack.c.l.b16 %v317
        %v519 = vunpack.c.l.b16 %v318
        %v520 = vunpack.c.l.b16 %v319
        %v521 = vunpack.c.l.b16 %v320
        %v522 = vunpack.c.l.b16 %v321
        %v523 = vunpack.c.l.b16 %v322
        %v524 = vunpack.c.l.b16 %v323
        %v525 = vunpack.c.l.b16 %v324
        %v526 = vunpack.c.l.b16 %v325
        %v527 = vunpack.c.l.b16 %v326
        %v528 = vunpack.c.l.b16 %v327
        %v529 = vunpack.c.l.b16 %v328
        %v530 = vunpack.c.l.b16 %v329
        %v531 = vunpack.c.l.b16 %v330
        %v532 = vunpack.c.l.b16 %v331
        %v533 = vunpack.c.l.b16 %v332
        %v534 = vunpack.c.l.b16 %v333
        %v535 = vunpack.c.l.b16 %v334
        %v536 = vunpack.c.l.b16 %v335
        %v537 = vunpack.c.l.b16 %v336
        %v538 = vpack.c.b16 %v515, %v514
        %v539 = vpack.c.b16 %v517, %v516
        %v540 = vpack.c.b16 %v519, %v518
        %v541 = vpack.c.b16 %v521, %v520
        %v542 = vpack.c.b16 %v523, %v522
        %v543 = vpack.c.b16 %v525, %v524
        %v544 = vpack.c.b16 %v527, %v526
        %v545 = vpack.c.b16 %v529, %v528
        %v546 = vpack.c.b16 %v531, %v530
        %v547 = vpack.c.b16 %v533, %v532
        %v548 = vpack.c.b16 %v535, %v534
        %v549 = vpack.c.b16 %v537, %v536
        %v562 = vsel %vm434, %v215, 0
        %v564 = vsel %vm434, %v224, 0
        %566 = vmatprep.subr.bf16.mxu0 0
        %567 = vmatpush1.bf16.msra.mxu0 %v538
        %568 = vmatprep.subr.bf16.mxu0 0
        %569 = vmatpush1.bf16.msra.mxu0 %v539
        %570 = vmatprep.subr.bf16.mxu0 0
        %571 = vmatpush1.bf16.msra.mxu0 %v540
        %572 = vmatprep.subr.bf16.mxu0 0
        %573 = vmatpush1.bf16.msra.mxu0 %v541
        %574 = vmatprep.subr.bf16.mxu0 0
        %575 = vmatpush1.bf16.msra.mxu0 %v542
        %576 = vmatprep.subr.bf16.mxu0 0
        %577 = vmatpush1.bf16.msra.mxu0 %v543
        %578 = vmatprep.subr.bf16.mxu0 0
        %579 = vmatpush1.bf16.msra.mxu0 %v544
        %580 = vmatprep.subr.bf16.mxu0 0
        %581 = vmatpush1.bf16.msra.mxu0 %v545
        %582 = vmatprep.subr.bf16.mxu0 0
        %583 = vmatpush1.bf16.msra.mxu0 %v546
        %584 = vmatprep.subr.bf16.mxu0 0
        %585 = vmatpush1.bf16.msra.mxu0 %v547
        %586 = vmatprep.subr.bf16.mxu0 0
        %587 = vmatpush1.bf16.msra.mxu0 %v548
        %588 = vmatprep.subr.bf16.mxu0 0
        %589 = vmatpush1.bf16.msra.mxu0 %v549
        %590 = vmatprep.subr.bf16.mxu0 0
        %591 = vmatpush1.bf16.msra.mxu0 0
        %592 = vmatprep.subr.bf16.mxu0 0
        %593 = vmatpush1.bf16.msra.mxu0 0
        %594 = vmatprep.subr.bf16.mxu0 0
        %595 = vmatpush1.bf16.msra.mxu0 0
        %596 = vmatprep.subr.bf16.mxu0 0
        %597 = vmatpush1.bf16.msra.mxu0 0
        %598 = vmatprep.mubr.bf16.mxu0 %v562
        %599 = vmatmul.mubr.bf16.gmra.mrb[0].mxu0 %v214
        %v600 = vpop.f32.mrb[0].mxu0
        %v601 = vadd.f32 %v476, %v600
        %v602 = vpop.f32.mrb[0].mxu0
        %v603 = vpop.f32.mrb[0].mxu0
        %v604 = vadd.f32 %v479, %v603
        %v605 = vpop.f32.mrb[0].mxu0
        %606 = vmatprep.mubr.bf16.mxu0 %v564
        %607 = vmatmul.mubr.bf16.gmra.mrb[0].mxu0 %v223
        %v608 = vpop.f32.mrb[0].mxu0
        %v609 = vadd.f32 %v484, %v608
        %v610 = vpop.f32.mrb[0].mxu0
        %v611 = vpop.f32.mrb[0].mxu0
        %v612 = vadd.f32 %v487, %v611
        %v613 = vpop.f32.mrb[0].mxu0
        %614 = vdwg.mxu0
        %s615 = scalar_lea.vmem %s1, 192
        %v616 = vld [vmem:[%s615] sm:$0xf]
        %v617 = vld [vmem:[%s615 + $0x4] sm:$0xf]
        %v618 = vld [vmem:[%s615 + $0x8] sm:$0xf]
        %v619 = vld [vmem:[%s615 + $0xc] sm:$0xf]
        %v620 = vld [vmem:[%s615 + $0x10] sm:$0xf]
        %v621 = vld [vmem:[%s615 + $0x14] sm:$0xf]
        %v622 = vld [vmem:[%s615 + $0x18] sm:$0xf]
        %v623 = vld [vmem:[%s615 + $0x1c] sm:$0xf]
        %v624 = vld [vmem:[%s615 + $0x20] sm:$0xf]
        %v625 = vld [vmem:[%s615 + $0x24] sm:$0xf]
        %v626 = vld [vmem:[%s615 + $0x28] sm:$0xf]
        %v627 = vld [vmem:[%s615 + $0x2c] sm:$0xf]
        %v628 = vld [vmem:[%s615 + $0x30] sm:$0xf]
        %v629 = vld [vmem:[%s615 + $0x34] sm:$0xf]
        %v630 = vld [vmem:[%s615 + $0x38] sm:$0xf]
        %v631 = vld [vmem:[%s615 + $0x3c] sm:$0xf]
        %v632 = vld [vmem:[%s615 + $0x40] sm:$0xf]
        %v633 = vld [vmem:[%s615 + $0x44] sm:$0xf]
        %v634 = vld [vmem:[%s615 + $0x48] sm:$0xf]
        %v635 = vld [vmem:[%s615 + $0x4c] sm:$0xf]
        %v636 = vld [vmem:[%s615 + $0x50] sm:$0xf]
        %v637 = vld [vmem:[%s615 + $0x54] sm:$0xf]
        %v638 = vld [vmem:[%s615 + $0x58] sm:$0xf]
        %v639 = vld [vmem:[%s615 + $0x5c] sm:$0xf]
        %v664 = vunpack.c.l.b16 %v616
        %v665 = vunpack.c.l.b16 %v617
        %v666 = vunpack.c.l.b16 %v618
        %v667 = vunpack.c.l.b16 %v619
        %v668 = vunpack.c.l.b16 %v620
        %v669 = vunpack.c.l.b16 %v621
        %v670 = vunpack.c.l.b16 %v622
        %v671 = vunpack.c.l.b16 %v623
        %v672 = vunpack.c.l.b16 %v624
        %v673 = vunpack.c.l.b16 %v625
        %v674 = vunpack.c.l.b16 %v626
        %v675 = vunpack.c.l.b16 %v627
        %v676 = vunpack.c.l.b16 %v628
        %v677 = vunpack.c.l.b16 %v629
        %v678 = vunpack.c.l.b16 %v630
        %v679 = vunpack.c.l.b16 %v631
        %v680 = vunpack.c.l.b16 %v632
        %v681 = vunpack.c.l.b16 %v633
        %v682 = vunpack.c.l.b16 %v634
        %v683 = vunpack.c.l.b16 %v635
        %v684 = vunpack.c.l.b16 %v636
        %v685 = vunpack.c.l.b16 %v637
        %v686 = vunpack.c.l.b16 %v638
        %v687 = vunpack.c.l.b16 %v639
        %v688 = vpack.c.b16 %v665, %v664
        %v689 = vpack.c.b16 %v667, %v666
        %v690 = vpack.c.b16 %v669, %v668
        %v691 = vpack.c.b16 %v671, %v670
        %v692 = vpack.c.b16 %v673, %v672
        %v693 = vpack.c.b16 %v675, %v674
        %v694 = vpack.c.b16 %v677, %v676
        %v695 = vpack.c.b16 %v679, %v678
        %v696 = vpack.c.b16 %v681, %v680
        %v697 = vpack.c.b16 %v683, %v682
        %v698 = vpack.c.b16 %v685, %v684
        %v699 = vpack.c.b16 %v687, %v686
        %v713 = vsel %vm434, %v281, 0
        %v716 = vsel %vm434, %v311, 0
        %718 = vmatprep.subr.bf16.mxu0 0
        %719 = vmatpush1.bf16.msra.mxu0 %v688
        %720 = vmatprep.subr.bf16.mxu0 0
        %721 = vmatpush1.bf16.msra.mxu0 %v689
        %722 = vmatprep.subr.bf16.mxu0 0
        %723 = vmatpush1.bf16.msra.mxu0 %v690
        %724 = vmatprep.subr.bf16.mxu0 0
        %725 = vmatpush1.bf16.msra.mxu0 %v691
        %726 = vmatprep.subr.bf16.mxu0 0
        %727 = vmatpush1.bf16.msra.mxu0 %v692
        %728 = vmatprep.subr.bf16.mxu0 0
        %729 = vmatpush1.bf16.msra.mxu0 %v693
        %730 = vmatprep.subr.bf16.mxu0 0
        %731 = vmatpush1.bf16.msra.mxu0 %v694
        %732 = vmatprep.subr.bf16.mxu0 0
        %733 = vmatpush1.bf16.msra.mxu0 %v695
        %734 = vmatprep.subr.bf16.mxu0 0
        %735 = vmatpush1.bf16.msra.mxu0 %v696
        %736 = vmatprep.subr.bf16.mxu0 0
        %737 = vmatpush1.bf16.msra.mxu0 %v697
        %738 = vmatprep.subr.bf16.mxu0 0
        %739 = vmatpush1.bf16.msra.mxu0 %v698
        %740 = vmatprep.subr.bf16.mxu0 0
        %741 = vmatpush1.bf16.msra.mxu0 %v699
        %742 = vmatprep.subr.bf16.mxu0 0
        %743 = vmatpush1.bf16.msra.mxu0 0
        %744 = vmatprep.subr.bf16.mxu0 0
        %745 = vmatpush1.bf16.msra.mxu0 0
        %746 = vmatprep.subr.bf16.mxu0 0
        %747 = vmatpush1.bf16.msra.mxu0 0
        %748 = vmatprep.subr.bf16.mxu0 0
        %749 = vmatpush1.bf16.msra.mxu0 0
        %750 = vmatprep.mubr.bf16.mxu0 %v713
        %751 = vmatmul.mubr.bf16.gmra.mrb[0].mxu0 %v269
        %v752 = vpop.f32.mrb[0].mxu0
        %v753 = vadd.f32 0.0, %v752
        %v754 = vpop.f32.mrb[0].mxu0
        %v755 = vpop.f32.mrb[0].mxu0
        %v756 = vadd.f32 0.0, %v755
        %v757 = vpop.f32.mrb[0].mxu0
        %758 = vmatprep.mubr.bf16.mxu0 %v716
        %759 = vmatmul.mubr.bf16.gmra.mrb[0].mxu0 %v299
        %v760 = vpop.f32.mrb[0].mxu0
        %v761 = vadd.f32 0.0, %v760
        %v762 = vpop.f32.mrb[0].mxu0
        %v763 = vpop.f32.mrb[0].mxu0
        %v764 = vadd.f32 0.0, %v763
        %v765 = vpop.f32.mrb[0].mxu0
        %766 = vdwg.mxu0
        %v767 = vadd.f32 %v601, %v753
        %v768 = vadd.f32 %v604, %v756
        %v769 = vadd.f32 %v609, %v761
        %v770 = vadd.f32 %v612, %v764
        %v771 = vld [vmem:[%s2] sm:$0x1]
        %v773 = vlaneseq
        %v774 = vshrl.u32 %v773, 7
        %v775 = vsub.s32 0, %v774
        %v776 = vrot.slane %v771, %v775
        %v778 = vmul.f32 %v767, %v776
        %v779 = vmul.f32 %v768, %v776
        %v780 = vmul.f32 %v769, %v776
        %v781 = vmul.f32 %v770, %v776
        %v782 = vld [vmem:[%s3] sm:$0x1]
        %v784 = vlaneseq
        %v785 = vshrl.u32 %v784, 7
        %v786 = vsub.s32 0, %v785
        %v787 = vrot.slane %v782, %v786
        %v789 = vadd.f32 %v778, %v787
        %v790 = vadd.f32 %v779, %v787
        %v791 = vadd.f32 %v780, %v787
        %v792 = vadd.f32 %v781, %v787
        %v793 = vmax.f32 %v789, 0.0
        %v794 = vmax.f32 %v790, 0.0
        %v795 = vmax.f32 %v791, 0.0
        %v796 = vmax.f32 %v792, 0.0
        %797 = vst [vmem:[%s193] sm:$0xff] %v793
        %798 = vst [vmem:[%s193 + $0x18] sm:$0xff] %v794
        %799 = vst [vmem:[%s193 + $0x30] sm:$0xff] %v795
        %800 = vst [vmem:[%s193 + $0x48] sm:$0xff] %v796
        %801 = vst [vmem:[%s193 + $0x8] sm:$0xff] %v793
        %802 = vst [vmem:[%s193 + $0x20] sm:$0xff] %v794
        %803 = vst [vmem:[%s193 + $0x38] sm:$0xff] %v795
        %804 = vst [vmem:[%s193 + $0x50] sm:$0xff] %v796
        %805 = vst [vmem:[%s193 + $0x10] sm:$0xff] %v793
        %806 = vst [vmem:[%s193 + $0x28] sm:$0xff] %v794
        %807 = vst [vmem:[%s193 + $0x40] sm:$0xff] %v795
        %808 = vst [vmem:[%s193 + $0x58] sm:$0xff] %v796
        %s809 = sand.u32 %s115, 1
        %s810 = scalar_lea.sflag [#allocation3], %s809
        %s811 = sand.u32 %s115, 1
        %s812 = smul.addr %s811, 96
        %s813 = scalar_lea.vmem [#allocation2], %s812
        // Predicated region
        $region37: #{multiscale_module4_forward.1} parent=35 // pred_check
          %p814 = pneg %p125
        $region38: #{multiscale_module4_forward.1} parent=35 // pred_check_branch
          %816 = sbr.rel (%p814) target = $region40
        $region39: #{multiscale_module4_forward.1} parent=35 // pred_region
          %s817 = smul.u32 2, %s18
          %s819 = ssub.s32 1536, 1536
          %820 = vsyncadd %s810, %s819
          %s821 = smul.addr %s817, 6
          %s822 = smul.addr %s821, 128
          %s823 = scalar_lea.hbm %s4, %s822
          %s824 = sshll.u32 %s813, 4
          %s825 = int_to_ptr.vmem [resolvable:$true] %s824
          %830 = dma.vmem_to_hbm [thread:$0]  %s825, 1536, %s823, %s810, 384, 384, 24
        $region40: #{multiscale_module4_forward.1} parent=35 // pred_fallthru
          _
      $region36: #{multiscale_module4_forward.1} parent=5 // pred_fallthru
        _
      %p831 = scmp.le.s32.totalorder 2, %s13
      // Predicated region
      $region41: #{multiscale_module4_forward.1} parent=5 // pred_check
        %p832 = pneg %p831
      $region42: #{multiscale_module4_forward.1} parent=5 // pred_check_branch
        %834 = sbr.rel (%p832) target = $region44
      $region43: #{multiscale_module4_forward.1} parent=5 // pred_region
        %s835 = ssub.s32 %s13, 2
        // Predicated region
        $region45: #{multiscale_module4_forward.1} parent=43 // pred_check
          %p836 = pneg %p131
        $region46: #{multiscale_module4_forward.1} parent=43 // pred_check_branch
          %838 = sbr.rel (%p836) target = $region48
        $region47: #{multiscale_module4_forward.1} parent=43 // pred_region
          %s839 = sand.u32 %s116, 1
          %s840 = scalar_lea.sflag [#allocation3], %s839
          %s841 = sand.u32 %s116, 1
          %s842 = smul.addr %s841, 96
          %s843 = scalar_lea.vmem [#allocation2], %s842
          %844 = dma.done %s840, 1536
        $region48: #{multiscale_module4_forward.1} parent=43 // pred_fallthru
          _
      $region44: #{multiscale_module4_forward.1} parent=5 // pred_fallthru
        _
    $region6: #{multiscale_module4_forward.1} parent=1 // loop_footer
      %s17 = sadd.s32 1, %s13
    $region7: #{multiscale_module4_forward.1} parent=1 // loop_footer_branch
      %12 = sbr.rel target = $region3
    $region8: #{multiscale_module4_forward.1} parent=1 // loop_exit
      _
    %845 = vsyncpa [#allocation3], 1
    %s846 = scalar_lea.sflag [#allocation3], 1
    %847 = vsyncpa %s846, 1

</llo_original>
